<compile_context>
chip_gen: v7x
topology: tpu7x:2x2x1
jax: 0.10.0
libtpu: 0.0.40
codegen_flags: <defaults>
</compile_context>

<pallas_src>
import functools

import jax
import jax.numpy as jnp
from jax.experimental import pallas as pl
from jax.experimental.pallas import tpu as pltpu


def _make_mend_kernel(has_residual: bool, use_scratch: bool, mask_on_x: bool):
    """Kernel for one (tj, ti) output tile:
         G[j, i] = sum_n mask[n] * delta[n, j] * x[n, i]
         out     = lr * (G [+ resid])                 (cast to out dtype)
    Grid is (out_tiles, in_tiles, token_tiles); token axis is the reduction."""

    def kernel(lr_ref, x_ref, delta_ref, mask_ref, *rest):
        idx = 0
        if has_residual:
            resid_ref = rest[idx]
            idx += 1
        out_ref = rest[idx]
        idx += 1
        acc_ref = rest[idx] if use_scratch else out_ref   # f32 out: acc in-place

        k = pl.program_id(2)

        @pl.when(k == 0)
        def _():
            acc_ref[...] = jnp.zeros_like(acc_ref)

        x = x_ref[...]                  # (tn, ti), native dtype (bf16/f32)
        d = delta_ref[...]              # (tn, tj)
        m = mask_ref[...]               # (tn, 1), 0/1 in the factor dtype
        if mask_on_x:
            x = x * m
        else:
            d = d * m

        # einsum('bi,bj->ji', x, delta) == delta^T @ x on the MXU, f32 acc.
        acc_ref[...] += jax.lax.dot_general(
            d, x,
            dimension_numbers=(((0,), (0,)), ((), ())),
            preferred_element_type=jnp.float32,
        ).astype(acc_ref.dtype)

        @pl.when(k == pl.num_programs(2) - 1)
        def _():
            g = acc_ref[...].astype(jnp.float32)
            if has_residual:
                # residual added BEFORE the lr scale, matching
                # `mean_grads[n] += p.grad; named_delta[n] = lr * g`.
                g = g + resid_ref[...].astype(jnp.float32)
            out_ref[...] = (lr_ref[0] * g).astype(out_ref.dtype)

    return kernel


def _pick_tile(dim: int, max_tile: int) -> int:
    """Full dim if small / not 128-aligned, else the largest 128-multiple
    divisor of `dim` that is <= max_tile (keeps the output lane-dense)."""
    if dim <= max_tile or dim % 128 != 0:
        return dim
    t = (max_tile // 128) * 128
    while dim % t != 0:
        t -= 128
    return t


@functools.partial(jax.jit,
                   static_argnames=("fp16", "outer_residual", "tn", "max_tile"))
def mend_named_delta_single(x, delta, attention_mask, edit_lr,
                            residual_grad=None, *, fp16=False,
                            outer_residual=False, tn=256, max_tile=512):
    """Compute named_delta for one inner parameter.

    x               : [B, S, in_dim]   captured layer input  (p.__x__)
    delta           : [B, S, out_dim]  captured output grad   (p.__delta__)
    attention_mask  : [B, S]           1/0 token mask
    edit_lr         : scalar           learned edit learning rate
    residual_grad   : [out_dim, in_dim] p.grad (only used if outer_residual)
    returns         : [out_dim, in_dim] (bf16 if fp16 else f32), targ='ji'
    """
    B, S, in_dim = x.shape
    out_dim = delta.shape[-1]
    n_tok = B * S

    # Stream the two big factors in their native dtype (bf16 in real MEND use);
    # the MXU consumes bf16 natively with f32 accumulation -> no up-cast here.
    xf = x.reshape(n_tok, in_dim)
    df = delta.reshape(n_tok, out_dim)

    # Mask whichever factor has the smaller feature dim (less VPU work / temp).
    mask_on_x = in_dim <= out_dim
    mdtype = xf.dtype if mask_on_x else df.dtype
    mf = attention_mask.reshape(n_tok, 1).astype(mdtype)

    # Pad the token axis to a multiple of tn; padded rows carry a zero mask so
    # they contribute nothing to the reduction.
    n_pad = (-n_tok) % tn
    if n_pad:
        xf = jnp.pad(xf, ((0, n_pad), (0, 0)))
        df = jnp.pad(df, ((0, n_pad), (0, 0)))
        mf = jnp.pad(mf, ((0, n_pad), (0, 0)))
    n_tok_p = n_tok + n_pad

    lr_arr = jnp.reshape(edit_lr, (1,)).astype(jnp.float32)

    out_dtype = jnp.bfloat16 if fp16 else jnp.float32
    has_residual = outer_residual and residual_grad is not None
    use_scratch = out_dtype != jnp.float32   # f32 out accumulates in place

    tj = _pick_tile(out_dim, max_tile)
    ti = _pick_tile(in_dim, max_tile)
    grid = (out_dim // tj, in_dim // ti, n_tok_p // tn)

    in_specs = [
        pl.BlockSpec(memory_space=pltpu.MemorySpace.SMEM),      # lr (1,)
        pl.BlockSpec((tn, ti), lambda j, i, k: (k, i)),         # x tile
        pl.BlockSpec((tn, tj), lambda j, i, k: (k, j)),         # delta tile
        pl.BlockSpec((tn, 1), lambda j, i, k: (k, 0)),          # mask tile
    ]
    inputs = [lr_arr, xf, df, mf]
    if has_residual:
        in_specs.append(pl.BlockSpec((tj, ti), lambda j, i, k: (j, i)))
        inputs.append(residual_grad)

    scratch_shapes = []
    if use_scratch:
        scratch_shapes.append(pltpu.VMEM((tj, ti), jnp.float32))

    bytes_accessed = (xf.size * xf.dtype.itemsize
                      + df.size * df.dtype.itemsize
                      + mf.size * mf.dtype.itemsize
                      + out_dim * in_dim * jnp.dtype(out_dtype).itemsize)
    if has_residual:
        bytes_accessed += residual_grad.size * residual_grad.dtype.itemsize

    kernel = _make_mend_kernel(has_residual, use_scratch, mask_on_x)

    return pl.pallas_call(
        kernel,
        out_shape=jax.ShapeDtypeStruct((out_dim, in_dim), out_dtype),
        grid_spec=pltpu.PrefetchScalarGridSpec(
            num_scalar_prefetch=0,
            grid=grid,
            in_specs=in_specs,
            out_specs=pl.BlockSpec((tj, ti), lambda j, i, k: (j, i)),
            scratch_shapes=scratch_shapes,
        ),
        compiler_params=pltpu.CompilerParams(
            # output-tile axes are parallel (megacore / v7x 2 TCs); the token
            # reduction axis must stay "arbitrary" and last.
            dimension_semantics=("parallel", "parallel", "arbitrary"),
        ),
        cost_estimate=pl.CostEstimate(
            flops=2 * n_tok_p * in_dim * out_dim,
            transcendentals=0,
            bytes_accessed=int(bytes_accessed),
        ),
    )(*inputs)


def editable_model_forward(hooked_factors, attention_mask, edit_lrs,
                           residual_grads=None, *, fp16=False,
                           outer_residual=False):
    """Mirror of EditableModel.forward()'s named_delta construction.

    hooked_factors : dict name -> (u [B,S,in], delta [B,S,out])
    attention_mask : [B, S]
    edit_lrs       : [num_inner_params]  (matches len(hooked_factors))
    """
    assert len(edit_lrs) == len(hooked_factors)
    named_delta = {}
    # TODO(synk): params with identical shapes could be stacked into one
    # pallas_call with a leading parallel axis; here the jit cache at least
    # reuses a single compilation per unique shape.
    for i, (name, (u, d)) in enumerate(hooked_factors.items()):
        resid = None
        if outer_residual and residual_grads is not None:
            resid = residual_grads[name]
        named_delta[name] = mend_named_delta_single(
            u, d, attention_mask, edit_lrs[i], resid,
            fp16=fp16, outer_residual=outer_residual)
    # TODO(synk): second base_model pass with named_delta applied (labels /
    # padding_mask / lengths branch) requires the external transformer.
    loss = None
    return named_delta, loss


if __name__ == "__main__":
    key = jax.random.PRNGKey(0)
    B, S = 2, 8                 # batch, sequence
    IN_DIM, OUT_DIM = 32, 32    # inner-param shape (in_features, out_features)
    NUM_INNER = 2               # two inner params -> two edit_lrs
    EDIT_LR = 0.1               # config.edit_lr; edit_lrs = [edit_lr]*num_inner

    k1, k2 = jax.random.split(key)
    hooked = {}
    for idx in range(NUM_INNER):
        ku, kd = jax.random.split(jax.random.fold_in(k1, idx))
        u = jax.random.normal(ku, (B, S, IN_DIM), jnp.float32)
        d = jax.random.normal(kd, (B, S, OUT_DIM), jnp.float32)
        hooked[f"model.layers.{10 + idx}.mlp.down_proj.weight"] = (u, d)

    attention_mask = (jax.random.uniform(k2, (B, S)) > 0.25).astype(jnp.int32)
    edit_lrs = jnp.full((NUM_INNER,), EDIT_LR, jnp.float32)

    ok = True

    # ---- case 1: f32 streaming, no residual (common path) ----
    named_delta, loss = editable_model_forward(
        hooked, attention_mask, edit_lrs, fp16=False, outer_residual=False)
    named_delta = jax.tree_util.tree_map(jax.block_until_ready, named_delta)
    for i, (name, (u, d)) in enumerate(hooked.items()):
        v = d * attention_mask[..., None].astype(d.dtype)
        ref = edit_lrs[i] * jnp.einsum(
            "bi,bj->ji", u.reshape(-1, IN_DIM), v.reshape(-1, OUT_DIM))
        got = named_delta[name]
        ok &= got.shape == (OUT_DIM, IN_DIM) and got.dtype == jnp.float32
        ok &= bool(jnp.allclose(got, ref, atol=1e-4, rtol=1e-4))

    # ---- case 2: bf16 streaming operands, fp16 output, outer residual ----
    hooked_bf16 = {n: (u.astype(jnp.bfloat16), d.astype(jnp.bfloat16))
                   for n, (u, d) in hooked.items()}
    resids = {n: jax.random.normal(jax.random.fold_in(k2, j),
                                   (OUT_DIM, IN_DIM), jnp.float32)
              for j, n in enumerate(hooked_bf16)}
    nd2, _ = editable_model_forward(
        hooked_bf16, attention_mask, edit_lrs, residual_grads=resids,
        fp16=True, outer_residual=True)
    nd2 = jax.tree_util.tree_map(jax.block_until_ready, nd2)
    for i, (name, (u, d)) in enumerate(hooked_bf16.items()):
        uf = u.astype(jnp.float32)
        vf = d.astype(jnp.float32) * attention_mask[..., None].astype(jnp.float32)
        ref = (edit_lrs[i] * (jnp.einsum("bi,bj->ji",
                                         uf.reshape(-1, IN_DIM),
                                         vf.reshape(-1, OUT_DIM))
                              + resids[name])).astype(jnp.bfloat16)
        got = nd2[name]
        ok &= got.shape == (OUT_DIM, IN_DIM) and got.dtype == jnp.bfloat16
        ok &= bool(jnp.allclose(got.astype(jnp.float32), ref.astype(jnp.float32),
                                atol=2e-2, rtol=2e-2))

    if ok:
        print("KERNEL_OK")
    else:
        print("KERNEL_MISMATCH")
</pallas_src>

<mosaic_0001>
module attributes {stable_mosaic.version = 11 : i64} {
  func.func @kernel(%arg0: i32, %arg1: i32, %arg2: i32, %arg3: memref<1xf32, #tpu.memory_space<smem>>, %arg4: memref<256x32xf32, #tpu.memory_space<vmem>>, %arg5: memref<256x32xf32, #tpu.memory_space<vmem>>, %arg6: memref<256x1xf32, #tpu.memory_space<vmem>>, %arg7: memref<32x32xf32, #tpu.memory_space<vmem>>) attributes {dimension_semantics = [#tpu.dimension_semantics<parallel>, #tpu.dimension_semantics<parallel>, #tpu.dimension_semantics<arbitrary>], iteration_bounds = array<i64: 1, 1, 1>, scalar_prefetch = 0 : i64, scratch_operands = 0 : i64, tpu.core_type = #tpu.core_type<tc>, window_params = [{transform_indices = @transform_0, window_bounds = array<i64: 1>}, {transform_indices = @transform_1, window_bounds = array<i64: 256, 32>}, {transform_indices = @transform_2, window_bounds = array<i64: 256, 32>}, {transform_indices = @transform_3, window_bounds = array<i64: 256, 1>}, {transform_indices = @transform_4, window_bounds = array<i64: 32, 32>}]} {
    %c0_i32 = arith.constant 0 : i32
    %0 = arith.cmpi eq, %arg2, %c0_i32 : i32
    %1 = arith.extui %0 : i1 to i32
    %c0_i32_0 = arith.constant 0 : i32
    %2 = arith.cmpi ne, %1, %c0_i32_0 : i32
    scf.if %2 {
      %cst_12 = arith.constant 0.000000e+00 : f32
      %15 = vector.broadcast %cst_12 : f32 to vector<32x32xf32>
      %c0_13 = arith.constant 0 : index
      %c0_14 = arith.constant 0 : index
      %16 = vector.load %arg7[%c0_13, %c0_14] : memref<32x32xf32, #tpu.memory_space<vmem>>, vector<32x32xf32>
      tpu.vector_store %arg7[%c0_13, %c0_14], %15 {strides = array<i32>} : memref<32x32xf32, #tpu.memory_space<vmem>>, vector<32x32xf32>,
    } else {
    }
    %c0 = arith.constant 0 : index
    %c0_1 = arith.constant 0 : index
    %3 = vector.load %arg4[%c0, %c0_1] : memref<256x32xf32, #tpu.memory_space<vmem>>, vector<256x32xf32>
    %c0_2 = arith.constant 0 : index
    %c0_3 = arith.constant 0 : index
    %4 = vector.load %arg5[%c0_2, %c0_3] : memref<256x32xf32, #tpu.memory_space<vmem>>, vector<256x32xf32>
    %c0_4 = arith.constant 0 : index
    %c0_5 = arith.constant 0 : index
    %5 = vector.load %arg6[%c0_4, %c0_5] : memref<256x1xf32, #tpu.memory_space<vmem>>, vector<256x1xf32>
    %6 = vector.broadcast %5 : vector<256x1xf32> to vector<256x32xf32>
    %7 = arith.mulf %3, %6 : vector<256x32xf32>
    %c0_6 = arith.constant 0 : index
    %c0_7 = arith.constant 0 : index
    %8 = vector.load %arg7[%c0_6, %c0_7] : memref<32x32xf32, #tpu.memory_space<vmem>>, vector<32x32xf32>
    %cst = arith.constant dense<0.000000e+00> : vector<32x32xf32>
    %9 = tpu.matmul %4, %7, %cst {dimension_numbers = #tpu.dot_dimension_numbers<[0], [0], [1], [1], [0, 1, 1, 1], [], []>} : vector<256x32xf32>, vector<256x32xf32>, vector<32x32xf32> -> vector<32x32xf32>
    %10 = arith.addf %8, %9 : vector<32x32xf32>
    %c0_8 = arith.constant 0 : index
    %c0_9 = arith.constant 0 : index
    %11 = vector.load %arg7[%c0_8, %c0_9] : memref<32x32xf32, #tpu.memory_space<vmem>>, vector<32x32xf32>
    tpu.vector_store %arg7[%c0_8, %c0_9], %10 {strides = array<i32>} : memref<32x32xf32, #tpu.memory_space<vmem>>, vector<32x32xf32>,
    %c0_i32_10 = arith.constant 0 : i32
    %12 = arith.cmpi eq, %arg2, %c0_i32_10 : i32
    %13 = arith.extui %12 : i1 to i32
    %c0_i32_11 = arith.constant 0 : i32
    %14 = arith.cmpi ne, %13, %c0_i32_11 : i32
    scf.if %14 {
      %c0_12 = arith.constant 0 : index
      %c0_13 = arith.constant 0 : index
      %15 = vector.load %arg7[%c0_12, %c0_13] : memref<32x32xf32, #tpu.memory_space<vmem>>, vector<32x32xf32>
      %c0_14 = arith.constant 0 : index
      %16 = memref.load %arg3[%c0_14] : memref<1xf32, #tpu.memory_space<smem>>
      %17 = vector.broadcast %16 : f32 to vector<32x32xf32>
      %18 = arith.mulf %17, %15 : vector<32x32xf32>
      %c0_15 = arith.constant 0 : index
      %c0_16 = arith.constant 0 : index
      %19 = vector.load %arg7[%c0_15, %c0_16] : memref<32x32xf32, #tpu.memory_space<vmem>>, vector<32x32xf32>
      tpu.vector_store %arg7[%c0_15, %c0_16], %18 {strides = array<i32>} : memref<32x32xf32, #tpu.memory_space<vmem>>, vector<32x32xf32>,
    } else {
    }
    return
  }
  func.func @transform_0(%arg0: i32, %arg1: i32, %arg2: i32) -> i32 {
    %c0_i32 = arith.constant 0 : i32
    %c0_i32_0 = arith.constant 0 : i32
    return %c0_i32 : i32
  }
  func.func @transform_1(%arg0: i32, %arg1: i32, %arg2: i32) -> (i32, i32) {
    %c0_i32 = arith.constant 0 : i32
    return %arg2, %arg1 : i32, i32
  }
  func.func @transform_2(%arg0: i32, %arg1: i32, %arg2: i32) -> (i32, i32) {
    %c0_i32 = arith.constant 0 : i32
    return %arg2, %arg0 : i32, i32
  }
  func.func @transform_3(%arg0: i32, %arg1: i32, %arg2: i32) -> (i32, i32) {
    %c0_i32 = arith.constant 0 : i32
    %c0_i32_0 = arith.constant 0 : i32
    return %arg2, %c0_i32 : i32, i32
  }
  func.func @transform_4(%arg0: i32, %arg1: i32, %arg2: i32) -> (i32, i32) {
    %c0_i32 = arith.constant 0 : i32
    return %arg0, %arg1 : i32, i32
  }
}

</mosaic_0001>

<llo_original>
// kernel: mend_named_delta_single.1
$region0: #{mend_named_delta_single.1}
  #allocation0 [shape = 'u32[]', space=smem, size = 0x4, offset = 0x4, fixed_abs, tag = 'smem constant byte address 0x4 - core index']
  #allocation1 [shape = 'u32[144,128]{1,0:T(1,128)}', space=vmem, size = 0x12000, scoped, tag = 'internal scratch']
  #allocation2 [shape = 'f32[1]{0:T(128)S(6)}', space=smem, size = 0x200, scoped, tag = 'scoped memory for mend_named_delta_single.1']
  %s0 = inlined_call_operand.<no memory space> [shape: f32[1], index: 0, kind: input, shape index: {}]
  %s1 = inlined_call_operand.vmem [shape: f32[256,32], index: 1, kind: input, shape index: {}]
  %s2 = inlined_call_operand.vmem [shape: f32[256,32], index: 2, kind: input, shape index: {}]
  %s3 = inlined_call_operand.vmem [shape: f32[256,1], index: 3, kind: input, shape index: {}]
  %s4 = inlined_call_operand.hbm [shape: f32[32,32], index: 4, kind: output, shape index: {}]
  %s5 = sld [smem:[#allocation0]]
  $region34: #{mend_named_delta_single.1} parent=0
    _
  %s7 = ssub.s32 1, %s5
  %s8 = scalar_select 0, %s7, %s5
  %9 = sst [smem:[#allocation2]] %s0
  $region1: #{mend_named_delta_single.1} parent=0
    #allocation3 [shape = 'u8[16384]{0}', space=vmem, size = 0x4000, scoped, tag = 'output window, operand 0, single buffered']
    #allocation4 [shape = 's32[1]{0}', space=sflag, size = 0x4, scoped, tag = 'scoped memory for mend_named_delta_single.1']
    %10 = vsyncpa [#allocation4], 0
    // Predicated region
    $region2: #{mend_named_delta_single.1} parent=1 // pred_check
      _
    $region3: #{mend_named_delta_single.1} parent=1 // pred_check_branch
      %12 = sbr.rel (0) target = $region5
    $region4: #{mend_named_delta_single.1} parent=1 // pred_region
      _
    $region5: #{mend_named_delta_single.1} parent=1 // pred_fallthru
      _
    // Predicated region
    $region6: #{mend_named_delta_single.1} parent=1 // pred_check
      _
    $region7: #{mend_named_delta_single.1} parent=1 // pred_check_branch
      %14 = sbr.rel (0) target = $region9
    $region8: #{mend_named_delta_single.1} parent=1 // pred_region
      _
    $region9: #{mend_named_delta_single.1} parent=1 // pred_fallthru
      _
    // Predicated region
    $region10: #{mend_named_delta_single.1} parent=1 // pred_check
      _
    $region11: #{mend_named_delta_single.1} parent=1 // pred_check_branch
      %16 = sbr.rel (0) target = $region13
    $region12: #{mend_named_delta_single.1} parent=1 // pred_region
      _
    $region13: #{mend_named_delta_single.1} parent=1 // pred_fallthru
      _
    // Predicated region
    $region14: #{mend_named_delta_single.1} parent=1 // pred_check
      _
    $region15: #{mend_named_delta_single.1} parent=1 // pred_check_branch
      %18 = sbr.rel (0) target = $region17
    $region16: #{mend_named_delta_single.1} parent=1 // pred_region
      _
    $region17: #{mend_named_delta_single.1} parent=1 // pred_fallthru
      _
    %p19 = scmp.eq.s32.totalorder 0, 0
    // Predicated region
    $region18: #{mend_named_delta_single.1} parent=1 // pred_check
      %p20 = pneg %p19
    $region19: #{mend_named_delta_single.1} parent=1 // pred_check_branch
      %22 = sbr.rel (%p20) target = $region21
    $region20: #{mend_named_delta_single.1} parent=1 // pred_region
      %vm23 = vcmask 261120
      %24 = vst.msk [vmem:[#allocation3] sm:$0xff] %vm23, 0.0
      %25 = vst.msk [vmem:[#allocation3 + $0x8] sm:$0xff] %vm23, 0.0
      %26 = vst.msk [vmem:[#allocation3 + $0x10] sm:$0xff] %vm23, 0.0
      %27 = vst.msk [vmem:[#allocation3 + $0x18] sm:$0xff] %vm23, 0.0
    $region21: #{mend_named_delta_single.1} parent=1 // pred_fallthru
      _
    %v28 = vld [vmem:[%s1] sm:$0xff]
    %v29 = vld [vmem:[%s1 + $0x8] sm:$0xff]
    %v30 = vld [vmem:[%s1 + $0x10] sm:$0xff]
    %v31 = vld [vmem:[%s1 + $0x18] sm:$0xff]
    %v32 = vld [vmem:[%s1 + $0x20] sm:$0xff]
    %v33 = vld [vmem:[%s1 + $0x28] sm:$0xff]
    %v34 = vld [vmem:[%s1 + $0x30] sm:$0xff]
    %v35 = vld [vmem:[%s1 + $0x38] sm:$0xff]
    %v36 = vld [vmem:[%s1 + $0x40] sm:$0xff]
    %v37 = vld [vmem:[%s1 + $0x48] sm:$0xff]
    %v38 = vld [vmem:[%s1 + $0x50] sm:$0xff]
    %v39 = vld [vmem:[%s1 + $0x58] sm:$0xff]
    %v40 = vld [vmem:[%s1 + $0x60] sm:$0xff]
    %v41 = vld [vmem:[%s1 + $0x68] sm:$0xff]
    %v42 = vld [vmem:[%s1 + $0x70] sm:$0xff]
    %v43 = vld [vmem:[%s1 + $0x78] sm:$0xff]
    %v44 = vld [vmem:[%s1 + $0x80] sm:$0xff]
    %v45 = vld [vmem:[%s1 + $0x88] sm:$0xff]
    %v46 = vld [vmem:[%s1 + $0x90] sm:$0xff]
    %v47 = vld [vmem:[%s1 + $0x98] sm:$0xff]
    %v48 = vld [vmem:[%s1 + $0xa0] sm:$0xff]
    %v49 = vld [vmem:[%s1 + $0xa8] sm:$0xff]
    %v50 = vld [vmem:[%s1 + $0xb0] sm:$0xff]
    %v51 = vld [vmem:[%s1 + $0xb8] sm:$0xff]
    %v52 = vld [vmem:[%s1 + $0xc0] sm:$0xff]
    %v53 = vld [vmem:[%s1 + $0xc8] sm:$0xff]
    %v54 = vld [vmem:[%s1 + $0xd0] sm:$0xff]
    %v55 = vld [vmem:[%s1 + $0xd8] sm:$0xff]
    %v56 = vld [vmem:[%s1 + $0xe0] sm:$0xff]
    %v57 = vld [vmem:[%s1 + $0xe8] sm:$0xff]
    %v58 = vld [vmem:[%s1 + $0xf0] sm:$0xff]
    %v59 = vld [vmem:[%s1 + $0xf8] sm:$0xff]
    %v60 = vld [vmem:[%s2] sm:$0xff]
    %v61 = vld [vmem:[%s2 + $0x8] sm:$0xff]
    %v62 = vld [vmem:[%s2 + $0x10] sm:$0xff]
    %v63 = vld [vmem:[%s2 + $0x18] sm:$0xff]
    %v64 = vld [vmem:[%s2 + $0x20] sm:$0xff]
    %v65 = vld [vmem:[%s2 + $0x28] sm:$0xff]
    %v66 = vld [vmem:[%s2 + $0x30] sm:$0xff]
    %v67 = vld [vmem:[%s2 + $0x38] sm:$0xff]
    %v68 = vld [vmem:[%s2 + $0x40] sm:$0xff]
    %v69 = vld [vmem:[%s2 + $0x48] sm:$0xff]
    %v70 = vld [vmem:[%s2 + $0x50] sm:$0xff]
    %v71 = vld [vmem:[%s2 + $0x58] sm:$0xff]
    %v72 = vld [vmem:[%s2 + $0x60] sm:$0xff]
    %v73 = vld [vmem:[%s2 + $0x68] sm:$0xff]
    %v74 = vld [vmem:[%s2 + $0x70] sm:$0xff]
    %v75 = vld [vmem:[%s2 + $0x78] sm:$0xff]
    %v76 = vld [vmem:[%s2 + $0x80] sm:$0xff]
    %v77 = vld [vmem:[%s2 + $0x88] sm:$0xff]
    %v78 = vld [vmem:[%s2 + $0x90] sm:$0xff]
    %v79 = vld [vmem:[%s2 + $0x98] sm:$0xff]
    %v80 = vld [vmem:[%s2 + $0xa0] sm:$0xff]
    %v81 = vld [vmem:[%s2 + $0xa8] sm:$0xff]
    %v82 = vld [vmem:[%s2 + $0xb0] sm:$0xff]
    %v83 = vld [vmem:[%s2 + $0xb8] sm:$0xff]
    %v84 = vld [vmem:[%s2 + $0xc0] sm:$0xff]
    %v85 = vld [vmem:[%s2 + $0xc8] sm:$0xff]
    %v86 = vld [vmem:[%s2 + $0xd0] sm:$0xff]
    %v87 = vld [vmem:[%s2 + $0xd8] sm:$0xff]
    %v88 = vld [vmem:[%s2 + $0xe0] sm:$0xff]
    %v89 = vld [vmem:[%s2 + $0xe8] sm:$0xff]
    %v90 = vld [vmem:[%s2 + $0xf0] sm:$0xff]
    %v91 = vld [vmem:[%s2 + $0xf8] sm:$0xff]
    %v92 = vld [vmem:[%s3] sm:$0xff]
    %v93 = vld [vmem:[%s3 + $0x8] sm:$0xff]
    %v94 = vld [vmem:[%s3 + $0x10] sm:$0xff]
    %v95 = vld [vmem:[%s3 + $0x18] sm:$0xff]
    %v96 = vld [vmem:[%s3 + $0x20] sm:$0xff]
    %v97 = vld [vmem:[%s3 + $0x28] sm:$0xff]
    %v98 = vld [vmem:[%s3 + $0x30] sm:$0xff]
    %v99 = vld [vmem:[%s3 + $0x38] sm:$0xff]
    %v100 = vld [vmem:[%s3 + $0x40] sm:$0xff]
    %v101 = vld [vmem:[%s3 + $0x48] sm:$0xff]
    %v102 = vld [vmem:[%s3 + $0x50] sm:$0xff]
    %v103 = vld [vmem:[%s3 + $0x58] sm:$0xff]
    %v104 = vld [vmem:[%s3 + $0x60] sm:$0xff]
    %v105 = vld [vmem:[%s3 + $0x68] sm:$0xff]
    %v106 = vld [vmem:[%s3 + $0x70] sm:$0xff]
    %v107 = vld [vmem:[%s3 + $0x78] sm:$0xff]
    %v108 = vld [vmem:[%s3 + $0x80] sm:$0xff]
    %v109 = vld [vmem:[%s3 + $0x88] sm:$0xff]
    %v110 = vld [vmem:[%s3 + $0x90] sm:$0xff]
    %v111 = vld [vmem:[%s3 + $0x98] sm:$0xff]
    %v112 = vld [vmem:[%s3 + $0xa0] sm:$0xff]
    %v113 = vld [vmem:[%s3 + $0xa8] sm:$0xff]
    %v114 = vld [vmem:[%s3 + $0xb0] sm:$0xff]
    %v115 = vld [vmem:[%s3 + $0xb8] sm:$0xff]
    %v116 = vld [vmem:[%s3 + $0xc0] sm:$0xff]
    %v117 = vld [vmem:[%s3 + $0xc8] sm:$0xff]
    %v118 = vld [vmem:[%s3 + $0xd0] sm:$0xff]
    %v119 = vld [vmem:[%s3 + $0xd8] sm:$0xff]
    %v120 = vld [vmem:[%s3 + $0xe0] sm:$0xff]
    %v121 = vld [vmem:[%s3 + $0xe8] sm:$0xff]
    %v122 = vld [vmem:[%s3 + $0xf0] sm:$0xff]
    %v123 = vld [vmem:[%s3 + $0xf8] sm:$0xff]
    %125 = vset.pattern.permute.xlu0 0
    %126 = vperm.xlu0 %125, %v92
    %v127 = vpop.permute.xlu0 %126
    %130 = vset.pattern.permute.xlu0 0
    %131 = vperm.xlu0 %130, %v93
    %v132 = vpop.permute.xlu0 %131
    %135 = vset.pattern.permute.xlu0 0
    %136 = vperm.xlu0 %135, %v94
    %v137 = vpop.permute.xlu0 %136
    %140 = vset.pattern.permute.xlu0 0
    %141 = vperm.xlu0 %140, %v95
    %v142 = vpop.permute.xlu0 %141
    %145 = vset.pattern.permute.xlu0 0
    %146 = vperm.xlu0 %145, %v96
    %v147 = vpop.permute.xlu0 %146
    %150 = vset.pattern.permute.xlu0 0
    %151 = vperm.xlu0 %150, %v97
    %v152 = vpop.permute.xlu0 %151
    %155 = vset.pattern.permute.xlu0 0
    %156 = vperm.xlu0 %155, %v98
    %v157 = vpop.permute.xlu0 %156
    %160 = vset.pattern.permute.xlu0 0
    %161 = vperm.xlu0 %160, %v99
    %v162 = vpop.permute.xlu0 %161
    %165 = vset.pattern.permute.xlu0 0
    %166 = vperm.xlu0 %165, %v100
    %v167 = vpop.permute.xlu0 %166
    %170 = vset.pattern.permute.xlu0 0
    %171 = vperm.xlu0 %170, %v101
    %v172 = vpop.permute.xlu0 %171
    %175 = vset.pattern.permute.xlu0 0
    %176 = vperm.xlu0 %175, %v102
    %v177 = vpop.permute.xlu0 %176
    %180 = vset.pattern.permute.xlu0 0
    %181 = vperm.xlu0 %180, %v103
    %v182 = vpop.permute.xlu0 %181
    %185 = vset.pattern.permute.xlu0 0
    %186 = vperm.xlu0 %185, %v104
    %v187 = vpop.permute.xlu0 %186
    %190 = vset.pattern.permute.xlu0 0
    %191 = vperm.xlu0 %190, %v105
    %v192 = vpop.permute.xlu0 %191
    %195 = vset.pattern.permute.xlu0 0
    %196 = vperm.xlu0 %195, %v106
    %v197 = vpop.permute.xlu0 %196
    %200 = vset.pattern.permute.xlu0 0
    %201 = vperm.xlu0 %200, %v107
    %v202 = vpop.permute.xlu0 %201
    %205 = vset.pattern.permute.xlu0 0
    %206 = vperm.xlu0 %205, %v108
    %v207 = vpop.permute.xlu0 %206
    %210 = vset.pattern.permute.xlu0 0
    %211 = vperm.xlu0 %210, %v109
    %v212 = vpop.permute.xlu0 %211
    %215 = vset.pattern.permute.xlu0 0
    %216 = vperm.xlu0 %215, %v110
    %v217 = vpop.permute.xlu0 %216
    %220 = vset.pattern.permute.xlu0 0
    %221 = vperm.xlu0 %220, %v111
    %v222 = vpop.permute.xlu0 %221
    %225 = vset.pattern.permute.xlu0 0
    %226 = vperm.xlu0 %225, %v112
    %v227 = vpop.permute.xlu0 %226
    %230 = vset.pattern.permute.xlu0 0
    %231 = vperm.xlu0 %230, %v113
    %v232 = vpop.permute.xlu0 %231
    %235 = vset.pattern.permute.xlu0 0
    %236 = vperm.xlu0 %235, %v114
    %v237 = vpop.permute.xlu0 %236
    %240 = vset.pattern.permute.xlu0 0
    %241 = vperm.xlu0 %240, %v115
    %v242 = vpop.permute.xlu0 %241
    %245 = vset.pattern.permute.xlu0 0
    %246 = vperm.xlu0 %245, %v116
    %v247 = vpop.permute.xlu0 %246
    %250 = vset.pattern.permute.xlu0 0
    %251 = vperm.xlu0 %250, %v117
    %v252 = vpop.permute.xlu0 %251
    %255 = vset.pattern.permute.xlu0 0
    %256 = vperm.xlu0 %255, %v118
    %v257 = vpop.permute.xlu0 %256
    %260 = vset.pattern.permute.xlu0 0
    %261 = vperm.xlu0 %260, %v119
    %v262 = vpop.permute.xlu0 %261
    %265 = vset.pattern.permute.xlu0 0
    %266 = vperm.xlu0 %265, %v120
    %v267 = vpop.permute.xlu0 %266
    %270 = vset.pattern.permute.xlu0 0
    %271 = vperm.xlu0 %270, %v121
    %v272 = vpop.permute.xlu0 %271
    %275 = vset.pattern.permute.xlu0 0
    %276 = vperm.xlu0 %275, %v122
    %v277 = vpop.permute.xlu0 %276
    %280 = vset.pattern.permute.xlu0 0
    %281 = vperm.xlu0 %280, %v123
    %v282 = vpop.permute.xlu0 %281
    %v284 = vmul.f32 %v28, %v127
    %v285 = vmul.f32 %v29, %v132
    %v286 = vmul.f32 %v30, %v137
    %v287 = vmul.f32 %v31, %v142
    %v288 = vmul.f32 %v32, %v147
    %v289 = vmul.f32 %v33, %v152
    %v290 = vmul.f32 %v34, %v157
    %v291 = vmul.f32 %v35, %v162
    %v292 = vmul.f32 %v36, %v167
    %v293 = vmul.f32 %v37, %v172
    %v294 = vmul.f32 %v38, %v177
    %v295 = vmul.f32 %v39, %v182
    %v296 = vmul.f32 %v40, %v187
    %v297 = vmul.f32 %v41, %v192
    %v298 = vmul.f32 %v42, %v197
    %v299 = vmul.f32 %v43, %v202
    %v300 = vmul.f32 %v44, %v207
    %v301 = vmul.f32 %v45, %v212
    %v302 = vmul.f32 %v46, %v217
    %v303 = vmul.f32 %v47, %v222
    %v304 = vmul.f32 %v48, %v227
    %v305 = vmul.f32 %v49, %v232
    %v306 = vmul.f32 %v50, %v237
    %v307 = vmul.f32 %v51, %v242
    %v308 = vmul.f32 %v52, %v247
    %v309 = vmul.f32 %v53, %v252
    %v310 = vmul.f32 %v54, %v257
    %v311 = vmul.f32 %v55, %v262
    %v312 = vmul.f32 %v56, %v267
    %v313 = vmul.f32 %v57, %v272
    %v314 = vmul.f32 %v58, %v277
    %v315 = vmul.f32 %v59, %v282
    %v316 = vld [vmem:[#allocation3] sm:$0xff]
    %v317 = vld [vmem:[#allocation3 + $0x8] sm:$0xff]
    %v318 = vld [vmem:[#allocation3 + $0x10] sm:$0xff]
    %v319 = vld [vmem:[#allocation3 + $0x18] sm:$0xff]
    %320 = vxpose.xlu0.b32.start [1/16] %v60, 128
    %321 = vxpose.xlu0.b32.cont [2/16] %v61, 128
    %322 = vxpose.xlu0.b32.cont [3/16] %v62, 128
    %323 = vxpose.xlu0.b32.cont [4/16] %v63, 128
    %324 = vxpose.xlu0.b32.cont [5/16] %v64, 128
    %325 = vxpose.xlu0.b32.cont [6/16] %v65, 128
    %326 = vxpose.xlu0.b32.cont [7/16] %v66, 128
    %327 = vxpose.xlu0.b32.cont [8/16] %v67, 128
    %328 = vxpose.xlu0.b32.cont [9/16] %v68, 128
    %329 = vxpose.xlu0.b32.cont [10/16] %v69, 128
    %330 = vxpose.xlu0.b32.cont [11/16] %v70, 128
    %331 = vxpose.xlu0.b32.cont [12/16] %v71, 128
    %332 = vxpose.xlu0.b32.cont [13/16] %v72, 128
    %333 = vxpose.xlu0.b32.cont [14/16] %v73, 128
    %334 = vxpose.xlu0.b32.cont [15/16] %v74, 128
    %335 = vxpose.xlu0.b32.end [16/16] %v75, 128
    %v336 = vpop.trf.xlu0
    %v337 = vpop.trf.xlu0
    %v338 = vpop.trf.xlu0
    %v339 = vpop.trf.xlu0
    %v340 = vpop.trf.xlu0
    %v341 = vpop.trf.xlu0
    %v342 = vpop.trf.xlu0
    %v343 = vpop.trf.xlu0
    %v344 = vpop.trf.xlu0
    %v345 = vpop.trf.xlu0
    %v346 = vpop.trf.xlu0
    %v347 = vpop.trf.xlu0
    %v348 = vpop.trf.xlu0
    %v349 = vpop.trf.xlu0
    %v350 = vpop.trf.xlu0
    %v351 = vpop.trf.xlu0
    %352 = vxpose.xlu0.b32.start [1/16] %v76, 128
    %353 = vxpose.xlu0.b32.cont [2/16] %v77, 128
    %354 = vxpose.xlu0.b32.cont [3/16] %v78, 128
    %355 = vxpose.xlu0.b32.cont [4/16] %v79, 128
    %356 = vxpose.xlu0.b32.cont [5/16] %v80, 128
    %357 = vxpose.xlu0.b32.cont [6/16] %v81, 128
    %358 = vxpose.xlu0.b32.cont [7/16] %v82, 128
    %359 = vxpose.xlu0.b32.cont [8/16] %v83, 128
    %360 = vxpose.xlu0.b32.cont [9/16] %v84, 128
    %361 = vxpose.xlu0.b32.cont [10/16] %v85, 128
    %362 = vxpose.xlu0.b32.cont [11/16] %v86, 128
    %363 = vxpose.xlu0.b32.cont [12/16] %v87, 128
    %364 = vxpose.xlu0.b32.cont [13/16] %v88, 128
    %365 = vxpose.xlu0.b32.cont [14/16] %v89, 128
    %366 = vxpose.xlu0.b32.cont [15/16] %v90, 128
    %367 = vxpose.xlu0.b32.end [16/16] %v91, 128
    %v368 = vpop.trf.xlu0
    %v369 = vpop.trf.xlu0
    %v370 = vpop.trf.xlu0
    %v371 = vpop.trf.xlu0
    %v372 = vpop.trf.xlu0
    %v373 = vpop.trf.xlu0
    %v374 = vpop.trf.xlu0
    %v375 = vpop.trf.xlu0
    %v376 = vpop.trf.xlu0
    %v377 = vpop.trf.xlu0
    %v378 = vpop.trf.xlu0
    %v379 = vpop.trf.xlu0
    %v380 = vpop.trf.xlu0
    %v381 = vpop.trf.xlu0
    %v382 = vpop.trf.xlu0
    %v383 = vpop.trf.xlu0
    %384 = vmatprep.subr.mxu0 0.0
    %385 = vmatpush1.msra.mxu0 %v284
    %386 = vmatprep.subr.mxu0 0.0
    %387 = vmatpush1.msra.mxu0 %v285
    %388 = vmatprep.subr.mxu0 0.0
    %389 = vmatpush1.msra.mxu0 %v286
    %390 = vmatprep.subr.mxu0 0.0
    %391 = vmatpush1.msra.mxu0 %v287
    %392 = vmatprep.subr.mxu0 0.0
    %393 = vmatpush1.msra.mxu0 %v288
    %394 = vmatprep.subr.mxu0 0.0
    %395 = vmatpush1.msra.mxu0 %v289
    %396 = vmatprep.subr.mxu0 0.0
    %397 = vmatpush1.msra.mxu0 %v290
    %398 = vmatprep.subr.mxu0 0.0
    %399 = vmatpush1.msra.mxu0 %v291
    %400 = vmatprep.subr.mxu0 0.0
    %401 = vmatpush1.msra.mxu0 %v292
    %402 = vmatprep.subr.mxu0 0.0
    %403 = vmatpush1.msra.mxu0 %v293
    %404 = vmatprep.subr.mxu0 0.0
    %405 = vmatpush1.msra.mxu0 %v294
    %406 = vmatprep.subr.mxu0 0.0
    %407 = vmatpush1.msra.mxu0 %v295
    %408 = vmatprep.subr.mxu0 0.0
    %409 = vmatpush1.msra.mxu0 %v296
    %410 = vmatprep.subr.mxu0 0.0
    %411 = vmatpush1.msra.mxu0 %v297
    %412 = vmatprep.subr.mxu0 0.0
    %413 = vmatpush1.msra.mxu0 %v298
    %414 = vmatprep.subr.mxu0 0.0
    %415 = vmatpush1.msra.mxu0 %v299
    %416 = vmatprep.subr.mxu0 0.0
    %417 = vmatpush1.msra.mxu0 %v300
    %418 = vmatprep.subr.mxu0 0.0
    %419 = vmatpush1.msra.mxu0 %v301
    %420 = vmatprep.subr.mxu0 0.0
    %421 = vmatpush1.msra.mxu0 %v302
    %422 = vmatprep.subr.mxu0 0.0
    %423 = vmatpush1.msra.mxu0 %v303
    %424 = vmatprep.subr.mxu0 0.0
    %425 = vmatpush1.msra.mxu0 %v304
    %426 = vmatprep.subr.mxu0 0.0
    %427 = vmatpush1.msra.mxu0 %v305
    %428 = vmatprep.subr.mxu0 0.0
    %429 = vmatpush1.msra.mxu0 %v306
    %430 = vmatprep.subr.mxu0 0.0
    %431 = vmatpush1.msra.mxu0 %v307
    %432 = vmatprep.subr.mxu0 0.0
    %433 = vmatpush1.msra.mxu0 %v308
    %434 = vmatprep.subr.mxu0 0.0
    %435 = vmatpush1.msra.mxu0 %v309
    %436 = vmatprep.subr.mxu0 0.0
    %437 = vmatpush1.msra.mxu0 %v310
    %438 = vmatprep.subr.mxu0 0.0
    %439 = vmatpush1.msra.mxu0 %v311
    %440 = vmatprep.subr.mxu0 0.0
    %441 = vmatpush1.msra.mxu0 %v312
    %442 = vmatprep.subr.mxu0 0.0
    %443 = vmatpush1.msra.mxu0 %v313
    %444 = vmatprep.subr.mxu0 0.0
    %445 = vmatpush1.msra.mxu0 %v314
    %446 = vmatprep.subr.mxu0 0.0
    %447 = vmatpush1.msra.mxu0 %v315
    %448 = vmatprep.mubr.f32.mxu0 %v368
    %449 = vmatmul.mubr.f32.gmra.mrb[0].mxu0 %v336
    %v450 = vpop.f32.mrb[0].mxu0
    %v451 = vadd.f32 0.0, %v450
    %v452 = vpop.f32.mrb[0].mxu0
    %453 = vmatprep.mubr.f32.mxu0 %v369
    %454 = vmatmul.mubr.f32.gmra.mrb[0].mxu0 %v337
    %v455 = vpop.f32.mrb[0].mxu0
    %v456 = vadd.f32 0.0, %v455
    %v457 = vpop.f32.mrb[0].mxu0
    %458 = vmatprep.mubr.f32.mxu0 %v370
    %459 = vmatmul.mubr.f32.gmra.mrb[0].mxu0 %v338
    %v460 = vpop.f32.mrb[0].mxu0
    %v461 = vadd.f32 0.0, %v460
    %v462 = vpop.f32.mrb[0].mxu0
    %463 = vmatprep.mubr.f32.mxu0 %v371
    %464 = vmatmul.mubr.f32.gmra.mrb[0].mxu0 %v339
    %v465 = vpop.f32.mrb[0].mxu0
    %v466 = vadd.f32 0.0, %v465
    %v467 = vpop.f32.mrb[0].mxu0
    %468 = vdwg.mxu0
    %v469 = vadd.f32 %v316, %v451
    %v470 = vadd.f32 %v317, %v456
    %v471 = vadd.f32 %v318, %v461
    %v472 = vadd.f32 %v319, %v466
    %vm473 = vcmask 261120
    %474 = vst.msk [vmem:[#allocation3] sm:$0xff] %vm473, %v469
    %475 = vst.msk [vmem:[#allocation3 + $0x8] sm:$0xff] %vm473, %v470
    %476 = vst.msk [vmem:[#allocation3 + $0x10] sm:$0xff] %vm473, %v471
    %477 = vst.msk [vmem:[#allocation3 + $0x18] sm:$0xff] %vm473, %v472
    // Predicated region
    $region22: #{mend_named_delta_single.1} parent=1 // pred_check
      %p478 = pneg %p19
    $region23: #{mend_named_delta_single.1} parent=1 // pred_check_branch
      %480 = sbr.rel (%p478) target = $region25
    $region24: #{mend_named_delta_single.1} parent=1 // pred_region
      %v481 = vld [vmem:[#allocation3] sm:$0xff]
      %v482 = vld [vmem:[#allocation3 + $0x8] sm:$0xff]
      %v483 = vld [vmem:[#allocation3 + $0x10] sm:$0xff]
      %v484 = vld [vmem:[#allocation3 + $0x18] sm:$0xff]
      %s485 = sld [smem:[#allocation2]]
      %v486 = vstv %s485
      %v487 = vmul.f32 %v486, %v481
      %v488 = vmul.f32 %v486, %v482
      %v489 = vmul.f32 %v486, %v483
      %v490 = vmul.f32 %v486, %v484
      %491 = vst.msk [vmem:[#allocation3] sm:$0xff] %vm473, %v487
      %492 = vst.msk [vmem:[#allocation3 + $0x8] sm:$0xff] %vm473, %v488
      %493 = vst.msk [vmem:[#allocation3 + $0x10] sm:$0xff] %vm473, %v489
      %494 = vst.msk [vmem:[#allocation3 + $0x18] sm:$0xff] %vm473, %v490
    $region25: #{mend_named_delta_single.1} parent=1 // pred_fallthru
      _
    // Predicated region
    $region26: #{mend_named_delta_single.1} parent=1 // pred_check
      _
    $region27: #{mend_named_delta_single.1} parent=1 // pred_check_branch
      %496 = sbr.rel (0) target = $region29
    $region28: #{mend_named_delta_single.1} parent=1 // pred_region
      %s498 = ssub.s32 512, 512
      %499 = vsyncadd [#allocation4], %s498
      %s500 = sshll.u32 [#allocation3], 4
      %s501 = int_to_ptr.vmem [resolvable:$true] %s500
      %506 = dma.vmem_to_hbm [thread:$0]  %s501, 512, %s4, [#allocation4], 128, 128, 8
    $region29: #{mend_named_delta_single.1} parent=1 // pred_fallthru
      _
    // Predicated region
    $region30: #{mend_named_delta_single.1} parent=1 // pred_check
      _
    $region31: #{mend_named_delta_single.1} parent=1 // pred_check_branch
      %508 = sbr.rel (0) target = $region33
    $region32: #{mend_named_delta_single.1} parent=1 // pred_region
      %509 = dma.done [#allocation4], 512
    $region33: #{mend_named_delta_single.1} parent=1 // pred_fallthru
      _
    %510 = vsyncpa [#allocation4], 1

</llo_original>
